<compile_context>
chip_gen: v6e
topology: v6e:2x2x1
jax: 0.10.0
libtpu: 0.0.40
codegen_flags: <defaults>
</compile_context>

<pallas_src>
import functools
import math

import jax
import jax.numpy as jnp
from jax.experimental import pallas as pl
from jax.experimental.pallas import tpu as pltpu

MiB = 1024 * 1024
_VMEM_CAP = 56 * MiB  # safe upper bound on all of v5e / v6e (128 MiB) / v7x (64 MiB)


# ----------------------------- helpers -------------------------------------


def _round_up(x, m):
    return ((x + m - 1) // m) * m


def _pick_row_tile(M, max_tm=256):
    """Row tile (multiple of 8; multiple of 128 when tiling) + padded row count.

    Bounds padding waste: among 128-multiple candidates <= max_tm, pick the one
    with the smallest padded total (ties -> larger tile)."""
    if M <= max_tm:
        tm = max(_round_up(M, 8), 8)
        return tm, tm
    cands = [c for c in (512, 384, 256, 128) if c <= max_tm] or [128]
    best_tm, best_mp = cands[0], _round_up(M, cands[0])
    for c in cands[1:]:
        mp = _round_up(M, c)
        if mp < best_mp:
            best_tm, best_mp = c, mp
    return best_tm, best_mp


def _pick_query_tile(S):
    if S <= 512:
        return S
    for tq in (512, 256, 128):
        if S % tq == 0:
            return tq
    return S


def _pad_rows(x, Mp):
    M = x.shape[0]
    return x if Mp == M else jnp.pad(x, ((0, Mp - M), (0, 0)))


def _const_spec(block_shape, index_map):
    """Single-buffered BlockSpec for blocks whose index never changes."""
    try:
        return pl.BlockSpec(block_shape, index_map, pipeline_mode=pl.Buffered(1))
    except (TypeError, AttributeError):  # older pallas without pipeline_mode
        return pl.BlockSpec(block_shape, index_map)


def _params(semantics, vmem_est_bytes):
    limit = int(min(max(vmem_est_bytes * 3 // 2, 16 * MiB), _VMEM_CAP))
    return pltpu.CompilerParams(
        dimension_semantics=semantics, vmem_limit_bytes=limit
    )


def _gelu(y):
    # tanh-approximation GELU (f32 epilogue, v5e-safe)
    return 0.5 * y * (
        1.0 + jnp.tanh(0.7978845608028654 * (y + 0.044715 * y * y * y))
    )


# ----------------------------- kernels -------------------------------------


def qkv_dense_kernel(x_ref, w_ref, b_ref, q_ref, kv_ref, *, hidden):
    # Fused QKV projection: one [K, 3H] matmul, two bf16 lane-dense outputs.
    x = x_ref[...].astype(jnp.bfloat16)
    y = jnp.dot(x, w_ref[...], preferred_element_type=jnp.float32) + b_ref[...]
    q_ref[...] = y[:, :hidden].astype(q_ref.dtype)
    kv_ref[...] = y[:, hidden:].astype(kv_ref.dtype)


def attn_kernel(q_ref, kv_ref, m_ref, o_ref, *, n_heads, head_dim, hidden):
    # One grid step = one (batch, query-tile); all heads, K/V full length.
    q = q_ref[0]                    # (tq, H)   bf16 (Q pre-scaled by 1/sqrt(dh))
    kv = kv_ref[0]                  # (S, 2H)   bf16
    mask = m_ref[0]                 # (1, S)    f32 additive, broadcast over rows

    # Process heads in 128-lane groups so the context stores stay lane-dense.
    gh = max(1, min(n_heads, 128 // max(head_dim, 1)))
    while n_heads % gh:
        gh -= 1

    for g0 in range(0, n_heads, gh):
        outs = []
        for h in range(g0, g0 + gh):
            lo = h * head_dim
            qh = q[:, lo:lo + head_dim]
            kh = kv[:, lo:lo + head_dim]
            vh = kv[:, hidden + lo:hidden + lo + head_dim]
            # contraction over head_dim without an explicit k.T
            s = jax.lax.dot_general(
                qh, kh, (((1,), (1,)), ((), ())),
                preferred_element_type=jnp.float32,
            )
            s = s + mask
            s_max = jnp.max(s, axis=-1, keepdims=True)
            p = jnp.exp(s - s_max)
            p = p * pl.reciprocal(jnp.sum(p, axis=-1, keepdims=True), approx=True)
            outs.append(
                jnp.dot(p.astype(jnp.bfloat16), vh,
                        preferred_element_type=jnp.float32)
            )
        grp = outs[0] if len(outs) == 1 else jnp.concatenate(outs, axis=-1)
        o_ref[0, :, g0 * head_dim:(g0 + gh) * head_dim] = grp.astype(o_ref.dtype)


def dense_add_ln_kernel(x_ref, w_ref, b_ref, r_ref, g_ref, bln_ref, o_ref, *, eps):
    # Fused: matmul + bias + residual add + LayerNorm (epilogue math in f32).
    x = x_ref[...].astype(jnp.bfloat16)
    y = (
        jnp.dot(x, w_ref[...], preferred_element_type=jnp.float32)
        + b_ref[...]
        + r_ref[...]
    )
    mean = jnp.mean(y, axis=-1, keepdims=True)
    var = jnp.mean(jnp.square(y - mean), axis=-1, keepdims=True)
    o_ref[...] = (y - mean) * jax.lax.rsqrt(var + eps) * g_ref[...] + bln_ref[...]


def ffn_kernel(x_ref, wi_ref, bi_ref, wf_ref, bf_ref, g_ref, bln_ref, o_ref, *, eps):
    # Fully fused FFN: the [tm, intermediate] activation never touches HBM.
    # The FFN input is also its own residual (one input stream).
    x32 = x_ref[...]                                     # (tm, H) f32
    h = jnp.dot(x32.astype(jnp.bfloat16), wi_ref[...],
                preferred_element_type=jnp.float32) + bi_ref[...]
    h = _gelu(h).astype(jnp.bfloat16)                    # bf16 intermediate in VMEM
    y = (
        jnp.dot(h, wf_ref[...], preferred_element_type=jnp.float32)
        + bf_ref[...]
        + x32
    )
    mean = jnp.mean(y, axis=-1, keepdims=True)
    var = jnp.mean(jnp.square(y - mean), axis=-1, keepdims=True)
    o_ref[...] = (y - mean) * jax.lax.rsqrt(var + eps) * g_ref[...] + bln_ref[...]


# ----------------------------- wrappers ------------------------------------


def qkv_dense(x, w, b, hidden, max_tm=256):
    """Fused QKV projection. x f32 [M, H]; w bf16 [H, 3H]; returns bf16 q, kv."""
    M, K = x.shape
    N = w.shape[1]
    tm, Mp = _pick_row_tile(M, max_tm)
    xp = _pad_rows(x, Mp)
    vmem_est = (tm * K * 4 * 2 + K * N * 2 + tm * N * 4
                + tm * hidden * 2 * 2 + tm * 2 * hidden * 2 * 2)
    ce = pl.CostEstimate(
        flops=2 * Mp * K * N,
        transcendentals=0,
        bytes_accessed=Mp * K * 4 + K * N * 2 + Mp * N * 2,
    )
    q, kv = pl.pallas_call(
        functools.partial(qkv_dense_kernel, hidden=hidden),
        out_shape=(jax.ShapeDtypeStruct((Mp, hidden), jnp.bfloat16),
                   jax.ShapeDtypeStruct((Mp, 2 * hidden), jnp.bfloat16)),
        grid=(Mp // tm,),
        in_specs=[
            pl.BlockSpec((tm, K), lambda i: (i, 0)),
            _const_spec((K, N), lambda i: (0, 0)),
            _const_spec((1, N), lambda i: (0, 0)),
        ],
        out_specs=(pl.BlockSpec((tm, hidden), lambda i: (i, 0)),
                   pl.BlockSpec((tm, 2 * hidden), lambda i: (i, 0))),
        compiler_params=_params(("parallel",), vmem_est),
        cost_estimate=ce,
    )(xp, w, b.reshape(1, N))
    if Mp != M:
        q, kv = q[:M], kv[:M]
    return q, kv


def mha_attention(q, kv, mask2d, n_heads):
    """q: [B,S,H] bf16 (pre-scaled), kv: [B,S,2H] bf16, mask2d: [B,S] additive."""
    B, S, H = q.shape
    dh = H // n_heads
    tq = _pick_query_tile(S)
    mask3 = mask2d.reshape(B, 1, S)
    vmem_est = (tq * H * 2 * 2 + S * 2 * H * 2 * 2 + S * 4 * 2
                + tq * H * 2 * 2 + tq * S * 4)
    ce = pl.CostEstimate(
        flops=4 * B * S * S * H,
        transcendentals=B * S * S,
        bytes_accessed=B * S * H * 2 + B * (S // tq) * S * 2 * H * 2 + B * S * H * 2,
    )
    return pl.pallas_call(
        functools.partial(attn_kernel, n_heads=n_heads, head_dim=dh, hidden=H),
        out_shape=jax.ShapeDtypeStruct((B, S, H), jnp.bfloat16),
        grid=(B, S // tq),
        in_specs=[
            pl.BlockSpec((1, tq, H), lambda b, i: (b, i, 0)),
            pl.BlockSpec((1, S, 2 * H), lambda b, i: (b, 0, 0)),
            pl.BlockSpec((1, 1, S), lambda b, i: (b, 0, 0)),
        ],
        out_specs=pl.BlockSpec((1, tq, H), lambda b, i: (b, i, 0)),
        compiler_params=_params(("parallel", "parallel"), vmem_est),
        cost_estimate=ce,
    )(q, kv, mask3)


def dense_add_ln(x, w, b, residual, gamma, beta, eps=1e-12, max_tm=256):
    """LayerNorm(x @ w + b + residual) * gamma + beta, fused in one kernel."""
    M, K = x.shape
    N = w.shape[1]
    tm, Mp = _pick_row_tile(M, max_tm)
    xp = _pad_rows(x, Mp)
    rp = _pad_rows(residual, Mp)
    xb = x.dtype.itemsize
    vmem_est = tm * K * xb * 2 + K * N * 2 + tm * N * 4 * 2 + tm * N * 4 * 2
    ce = pl.CostEstimate(
        flops=2 * Mp * K * N,
        transcendentals=Mp,
        bytes_accessed=Mp * K * xb + K * N * 2 + Mp * N * 8,
    )
    out = pl.pallas_call(
        functools.partial(dense_add_ln_kernel, eps=eps),
        out_shape=jax.ShapeDtypeStruct((Mp, N), jnp.float32),
        grid=(Mp // tm,),
        in_specs=[
            pl.BlockSpec((tm, K), lambda i: (i, 0)),
            _const_spec((K, N), lambda i: (0, 0)),
            _const_spec((1, N), lambda i: (0, 0)),
            pl.BlockSpec((tm, N), lambda i: (i, 0)),
            _const_spec((1, N), lambda i: (0, 0)),
            _const_spec((1, N), lambda i: (0, 0)),
        ],
        out_specs=pl.BlockSpec((tm, N), lambda i: (i, 0)),
        compiler_params=_params(("parallel",), vmem_est),
        cost_estimate=ce,
    )(xp, w, b.reshape(1, N), rp, gamma.reshape(1, N), beta.reshape(1, N))
    return out if Mp == M else out[:M]


def ffn_fused(x, wi, bi, wf, bf, gamma, beta, eps=1e-12, max_tm=256):
    """LayerNorm(GELU(x @ wi + bi) @ wf + bf + x) * gamma + beta, one kernel."""
    M, H = x.shape
    I = wi.shape[1]
    tm, Mp = _pick_row_tile(M, max_tm)
    xp = _pad_rows(x, Mp)
    vmem_est = (tm * H * 4 * 2 + H * I * 2 + I * H * 2
                + tm * I * 4 + tm * I * 2 + tm * H * 4 * 2)
    ce = pl.CostEstimate(
        flops=4 * Mp * H * I,
        transcendentals=Mp * I,
        bytes_accessed=Mp * H * 8 + H * I * 4,
    )
    out = pl.pallas_call(
        functools.partial(ffn_kernel, eps=eps),
        out_shape=jax.ShapeDtypeStruct((Mp, H), jnp.float32),
        grid=(Mp // tm,),
        in_specs=[
            pl.BlockSpec((tm, H), lambda i: (i, 0)),
            _const_spec((H, I), lambda i: (0, 0)),
            _const_spec((1, I), lambda i: (0, 0)),
            _const_spec((I, H), lambda i: (0, 0)),
            _const_spec((1, H), lambda i: (0, 0)),
            _const_spec((1, H), lambda i: (0, 0)),
            _const_spec((1, H), lambda i: (0, 0)),
        ],
        out_specs=pl.BlockSpec((tm, H), lambda i: (i, 0)),
        compiler_params=_params(("parallel",), vmem_est),
        cost_estimate=ce,
    )(xp, wi, bi.reshape(1, I), wf, bf.reshape(1, H),
      gamma.reshape(1, H), beta.reshape(1, H))
    return out if Mp == M else out[:M]


# ----------------------------- model glue -----------------------------------


def prepare_layer_params(p, n_heads):
    """Fuse QKV, fold the attention scale into Q, pre-cast weights to bf16."""
    H = p["wq"].shape[0]
    scale = 1.0 / math.sqrt(H // n_heads)
    return {
        "w_qkv": jnp.concatenate(
            [p["wq"] * scale, p["wk"], p["wv"]], axis=1
        ).astype(jnp.bfloat16),
        "b_qkv": jnp.concatenate([p["bq"] * scale, p["bk"], p["bv"]]),
        "wo": p["wo"].astype(jnp.bfloat16),
        "bo": p["bo"],
        "ln1_g": p["ln1_g"],
        "ln1_b": p["ln1_b"],
        "wi": p["wi"].astype(jnp.bfloat16),
        "bi": p["bi"],
        "wf": p["wf"].astype(jnp.bfloat16),
        "bf": p["bf"],
        "ln2_g": p["ln2_g"],
        "ln2_b": p["ln2_b"],
    }


def bert_encoder_layer(h, mask2d, p, n_heads, eps=1e-12):
    B, S, H = h.shape
    x2 = h.reshape(B * S, H)

    # Fused QKV projection -> bf16 q / kv slabs (1/sqrt(dh) folded into Q).
    q, kv = qkv_dense(x2, p["w_qkv"], p["b_qkv"], H)

    # Query-tiled all-heads attention on the bf16 slabs; bf16 context out.
    ctx = mha_attention(q.reshape(B, S, H), kv.reshape(B, S, 2 * H), mask2d, n_heads)

    # Output projection + residual + LayerNorm, fused.
    h1 = dense_add_ln(
        ctx.reshape(B * S, H), p["wo"], p["bo"], x2, p["ln1_g"], p["ln1_b"], eps
    )

    # Fully fused FFN (GELU intermediate never leaves VMEM).
    h2 = ffn_fused(h1, p["wi"], p["bi"], p["wf"], p["bf"],
                   p["ln2_g"], p["ln2_b"], eps)

    return h2.reshape(B, S, H)


def init_layer_params(key, hidden, intermediate):
    ks = jax.random.split(key, 6)
    std = 0.02
    return {
        "wq": jax.random.normal(ks[0], (hidden, hidden), jnp.float32) * std,
        "bq": jnp.zeros((hidden,), jnp.float32),
        "wk": jax.random.normal(ks[1], (hidden, hidden), jnp.float32) * std,
        "bk": jnp.zeros((hidden,), jnp.float32),
        "wv": jax.random.normal(ks[2], (hidden, hidden), jnp.float32) * std,
        "bv": jnp.zeros((hidden,), jnp.float32),
        "wo": jax.random.normal(ks[3], (hidden, hidden), jnp.float32) * std,
        "bo": jnp.zeros((hidden,), jnp.float32),
        "ln1_g": jnp.ones((hidden,), jnp.float32),
        "ln1_b": jnp.zeros((hidden,), jnp.float32),
        "wi": jax.random.normal(ks[4], (hidden, intermediate), jnp.float32) * std,
        "bi": jnp.zeros((intermediate,), jnp.float32),
        "wf": jax.random.normal(ks[5], (intermediate, hidden), jnp.float32) * std,
        "bf": jnp.zeros((hidden,), jnp.float32),
        "ln2_g": jnp.ones((hidden,), jnp.float32),
        "ln2_b": jnp.zeros((hidden,), jnp.float32),
    }


def model2_forward(encoder_layers, extended_attention_mask, prepared_params, n_heads):
    """Equivalent of Model2.forward: (out, mask) = bert_2(hidden, ext_mask)."""
    B, S, _ = encoder_layers.shape
    # Extended mask must be the HF-style additive [B, 1, 1, S] mask.
    assert extended_attention_mask.shape == (B, 1, 1, S)
    mask2d = extended_attention_mask.reshape(B, S)
    h = encoder_layers
    for layer_params in prepared_params:
        h = bert_encoder_layer(h, mask2d, layer_params, n_heads)
    return h, extended_attention_mask


# ----------------------------- main -----------------------------------------

if __name__ == "__main__":
    B, S, H = 2, 8, 32
    N_HEADS = 4
    INTERMEDIATE = 64
    N_LAYERS = 2

    key = jax.random.PRNGKey(0)
    k_in, k_params = jax.random.split(key)

    # Inputs that shard 1 would hand over: hidden states + extended attention mask.
    encoder_layers = jax.random.normal(k_in, (B, S, H), jnp.float32)
    # token mask: sequence 0 fully valid, sequence 1 has 2 padding positions
    token_mask = jnp.array([[1] * S, [1] * (S - 2) + [0, 0]], dtype=jnp.float32)
    extended_attention_mask = (1.0 - token_mask)[:, None, None, :] * -10000.0

    raw_params = [
        init_layer_params(k, H, INTERMEDIATE)
        for k in jax.random.split(k_params, N_LAYERS)
    ]
    prepared_params = [prepare_layer_params(p, N_HEADS) for p in raw_params]

    out, mask = model2_forward(
        encoder_layers, extended_attention_mask, prepared_params, N_HEADS
    )
    jax.block_until_ready((out, mask))

    assert out.shape == (B, S, H) and mask.shape == (B, 1, 1, S)
    assert bool(jnp.all(jnp.isfinite(out)))
    print("KERNEL_OK")
</pallas_src>

<mosaic_0001>
module attributes {stable_mosaic.version = 11 : i64} {
  func.func @qkv_dense_kernel(%arg0: i32, %arg1: memref<16x32xf32, #tpu.memory_space<vmem>>, %arg2: memref<32x96xbf16, #tpu.memory_space<vmem>>, %arg3: memref<1x96xf32, #tpu.memory_space<vmem>>, %arg4: memref<16x32xbf16, #tpu.memory_space<vmem>>, %arg5: memref<16x64xbf16, #tpu.memory_space<vmem>>) attributes {dimension_semantics = [#tpu.dimension_semantics<parallel>], iteration_bounds = array<i64: 1>, scalar_prefetch = 0 : i64, scratch_operands = 0 : i64, tpu.core_type = #tpu.core_type<tc>, window_params = [{transform_indices = @transform_0, window_bounds = array<i64: 16, 32>}, {pipeline_mode = #tpu.pipeline_mode<synchronous>, transform_indices = @transform_1, window_bounds = array<i64: 32, 96>}, {pipeline_mode = #tpu.pipeline_mode<synchronous>, transform_indices = @transform_2, window_bounds = array<i64: 1, 96>}, {transform_indices = @transform_3, window_bounds = array<i64: 16, 32>}, {transform_indices = @transform_4, window_bounds = array<i64: 16, 64>}]} {
    %c0 = arith.constant 0 : index
    %c0_0 = arith.constant 0 : index
    %0 = vector.load %arg1[%c0, %c0_0] : memref<16x32xf32, #tpu.memory_space<vmem>>, vector<16x32xf32>
    %1 = arith.truncf %0 : vector<16x32xf32> to vector<16x32xbf16>
    %c0_1 = arith.constant 0 : index
    %c0_2 = arith.constant 0 : index
    %2 = vector.load %arg2[%c0_1, %c0_2] : memref<32x96xbf16, #tpu.memory_space<vmem>>, vector<32x96xbf16>
    %cst = arith.constant dense<0.000000e+00> : vector<16x96xf32>
    %3 = tpu.matmul %1, %2, %cst {dimension_numbers = #tpu.dot_dimension_numbers<[1], [0], [0], [1], [0, 0, 1, 1], [], []>} : vector<16x32xbf16>, vector<32x96xbf16>, vector<16x96xf32> -> vector<16x96xf32>
    %c0_3 = arith.constant 0 : index
    %c0_4 = arith.constant 0 : index
    %4 = vector.load %arg3[%c0_3, %c0_4] : memref<1x96xf32, #tpu.memory_space<vmem>>, vector<1x96xf32>
    %5 = vector.broadcast %4 : vector<1x96xf32> to vector<16x96xf32>
    %6 = arith.addf %3, %5 : vector<16x96xf32>
    %7 = vector.extract_strided_slice %6 {offsets = [0, 0], sizes = [16, 32], strides = [1, 1]} : vector<16x96xf32> to vector<16x32xf32>
    %8 = arith.truncf %7 : vector<16x32xf32> to vector<16x32xbf16>
    %c0_5 = arith.constant 0 : index
    %c0_6 = arith.constant 0 : index
    %9 = vector.load %arg4[%c0_5, %c0_6] : memref<16x32xbf16, #tpu.memory_space<vmem>>, vector<16x32xbf16>
    tpu.vector_store %arg4[%c0_5, %c0_6], %8 {strides = array<i32>} : memref<16x32xbf16, #tpu.memory_space<vmem>>, vector<16x32xbf16>,
    %10 = vector.extract_strided_slice %6 {offsets = [0, 32], sizes = [16, 64], strides = [1, 1]} : vector<16x96xf32> to vector<16x64xf32>
    %11 = arith.truncf %10 : vector<16x64xf32> to vector<16x64xbf16>
    %c0_7 = arith.constant 0 : index
    %c0_8 = arith.constant 0 : index
    %12 = vector.load %arg5[%c0_7, %c0_8] : memref<16x64xbf16, #tpu.memory_space<vmem>>, vector<16x64xbf16>
    tpu.vector_store %arg5[%c0_7, %c0_8], %11 {strides = array<i32>} : memref<16x64xbf16, #tpu.memory_space<vmem>>, vector<16x64xbf16>,
    return
  }
  func.func @transform_0(%arg0: i32) -> (i32, i32) {
    %c0_i32 = arith.constant 0 : i32
    %c0_i32_0 = arith.constant 0 : i32
    return %arg0, %c0_i32 : i32, i32
  }
  func.func @transform_1(%arg0: i32) -> (i32, i32) {
    %c0_i32 = arith.constant 0 : i32
    %c0_i32_0 = arith.constant 0 : i32
    %c0_i32_1 = arith.constant 0 : i32
    return %c0_i32, %c0_i32_0 : i32, i32
  }
  func.func @transform_2(%arg0: i32) -> (i32, i32) {
    %c0_i32 = arith.constant 0 : i32
    %c0_i32_0 = arith.constant 0 : i32
    %c0_i32_1 = arith.constant 0 : i32
    return %c0_i32, %c0_i32_0 : i32, i32
  }
  func.func @transform_3(%arg0: i32) -> (i32, i32) {
    %c0_i32 = arith.constant 0 : i32
    %c0_i32_0 = arith.constant 0 : i32
    return %arg0, %c0_i32 : i32, i32
  }
  func.func @transform_4(%arg0: i32) -> (i32, i32) {
    %c0_i32 = arith.constant 0 : i32
    %c0_i32_0 = arith.constant 0 : i32
    return %arg0, %c0_i32 : i32, i32
  }
}

</mosaic_0001>

<llo_original>
// kernel: tpu_custom_call.1
$region0: #{tpu_custom_call.1}
  #allocation0 [shape = 'u32[]', space=smem, size = 0x4, offset = 0x4, fixed_abs, tag = 'smem constant byte address 0x4 - core index']
  #allocation1 [shape = 'u32[144,128]{1,0:T(1,128)}', space=vmem, size = 0x12000, scoped, tag = 'internal scratch']
  %s0 = inlined_call_operand.hbm [shape: f32[16,32], index: 0, kind: input, shape index: {}]
  %s1 = inlined_call_operand.hbm [shape: bf16[32,96], index: 1, kind: input, shape index: {}]
  %s2 = inlined_call_operand.vmem [shape: f32[1,96], index: 2, kind: input, shape index: {}]
  %s3 = inlined_call_operand.hbm [shape: bf16[16,32], index: 3, kind: output, shape index: {0}]
  %s4 = inlined_call_operand.hbm [shape: bf16[16,64], index: 4, kind: output, shape index: {1}]
  %5 = xla_tuple %s3, %s4
  %s6 = sld [smem:[#allocation0]]
  $region38: #{tpu_custom_call.1} parent=0
    _
  %s8 = ssub.s32 1, %s6
  %s9 = scalar_select 0, %s8, %s6
  $region1: #{tpu_custom_call.1} parent=0
    #allocation2 [shape = 'u8[8192]{0}', space=vmem, size = 0x2000, scoped, tag = 'input window, operand 0, single buffered']
    #allocation3 [shape = 's32[1]{0}', space=sflag, size = 0x4, scoped, tag = 'scoped memory for tpu_custom_call.1']
    #allocation4 [shape = 's32[1]{0}', space=sflag, size = 0x4, scoped, tag = 'scoped memory for tpu_custom_call.1']
    #allocation5 [shape = 'u8[8192]{0}', space=vmem, size = 0x2000, scoped, tag = 'input window, operand 1, single buffered']
    #allocation6 [shape = 's32[1]{0}', space=sflag, size = 0x4, scoped, tag = 'scoped memory for tpu_custom_call.1']
    #allocation7 [shape = 'u8[4096]{0}', space=vmem, size = 0x1000, scoped, tag = 'output window, operand 0, single buffered']
    #allocation8 [shape = 'u8[4096]{0}', space=vmem, size = 0x1000, scoped, tag = 'output window, operand 1, single buffered']
    #allocation9 [shape = 's32[1]{0}', space=sflag, size = 0x4, scoped, tag = 'scoped memory for tpu_custom_call.1']
    %10 = vsyncpa [#allocation3], 0
    %11 = vsyncpa [#allocation6], 0
    %12 = vsyncpa [#allocation4], 0
    %13 = vsyncpa [#allocation9], 0
    // Predicated region
    $region2: #{tpu_custom_call.1} parent=1 // pred_check
      _
    $region3: #{tpu_custom_call.1} parent=1 // pred_check_branch
      %15 = sbr.rel (0) target = $region5
    $region4: #{tpu_custom_call.1} parent=1 // pred_region
      %s17 = ssub.s32 256, 256
      %18 = vsyncadd [#allocation3], %s17
      %s19 = sshll.u32 [#allocation2], 4
      %s20 = int_to_ptr.vmem [resolvable:$true] %s19
      %25 = dma.hbm_to_vmem [thread:$0]  %s0, 256, %s20, [#allocation3], 128, 128, 8
    $region5: #{tpu_custom_call.1} parent=1 // pred_fallthru
      _
    // Predicated region
    $region6: #{tpu_custom_call.1} parent=1 // pred_check
      _
    $region7: #{tpu_custom_call.1} parent=1 // pred_check_branch
      %27 = sbr.rel (0) target = $region9
    $region8: #{tpu_custom_call.1} parent=1 // pred_region
      %s29 = ssub.s32 256, 256
      %30 = vsyncadd [#allocation6], %s29
      %s31 = sshll.u32 [#allocation5], 4
      %s32 = int_to_ptr.vmem [resolvable:$true] %s31
      %37 = dma.hbm_to_vmem [thread:$0]  %s1, 256, %s32, [#allocation6], 64, 64, 4
    $region9: #{tpu_custom_call.1} parent=1 // pred_fallthru
      _
    // Predicated region
    $region10: #{tpu_custom_call.1} parent=1 // pred_check
      _
    $region11: #{tpu_custom_call.1} parent=1 // pred_check_branch
      %39 = sbr.rel (0) target = $region13
    $region12: #{tpu_custom_call.1} parent=1 // pred_region
      _
    $region13: #{tpu_custom_call.1} parent=1 // pred_fallthru
      _
    // Predicated region
    $region14: #{tpu_custom_call.1} parent=1 // pred_check
      _
    $region15: #{tpu_custom_call.1} parent=1 // pred_check_branch
      %41 = sbr.rel (0) target = $region17
    $region16: #{tpu_custom_call.1} parent=1 // pred_region
      %42 = dma.done [#allocation3], 256
    $region17: #{tpu_custom_call.1} parent=1 // pred_fallthru
      _
    // Predicated region
    $region18: #{tpu_custom_call.1} parent=1 // pred_check
      _
    $region19: #{tpu_custom_call.1} parent=1 // pred_check_branch
      %44 = sbr.rel (0) target = $region21
    $region20: #{tpu_custom_call.1} parent=1 // pred_region
      %45 = dma.done [#allocation6], 256
    $region21: #{tpu_custom_call.1} parent=1 // pred_fallthru
      _
    %v47 = vld [vmem:[#allocation2] sm:$0xff]
    %v48 = vld [vmem:[#allocation2 + $0x8] sm:$0xff]
    %v49 = vpack.c.bf16 %v48, %v47
    %v50 = vld [vmem:[#allocation5] sm:$0xf]
    %v51 = vld [vmem:[#allocation5 + $0x4] sm:$0xf]
    %v52 = vld [vmem:[#allocation5 + $0x8] sm:$0xf]
    %v53 = vld [vmem:[#allocation5 + $0xc] sm:$0xf]
    %v54 = vld [vmem:[%s2] sm:$0x1]
    %v56 = vlaneseq
    %v57 = vshrl.u32 %v56, 7
    %v58 = vsub.s32 0, %v57
    %v59 = vrot.slane %v54, %v58
    %v65 = vunpack.c.l.b16 %v50
    %v66 = vunpack.c.l.b16 %v51
    %v67 = vunpack.c.l.b16 %v52
    %v68 = vunpack.c.l.b16 %v53
    %v69 = vpack.c.b16 %v66, %v65
    %v70 = vpack.c.b16 %v68, %v67
    %vm73 = vcmask 261120
    %v75 = vsel %vm73, %v49, 0
    %77 = vmatprep.subr.bf16.mxu0 0
    %78 = vmatpush1.bf16.msra.mxu0 0
    %79 = vmatprep.subr.bf16.mxu0 0
    %80 = vmatpush1.bf16.msra.mxu0 0
    %81 = vmatprep.subr.bf16.mxu0 0
    %82 = vmatpush1.bf16.msra.mxu0 0
    %83 = vmatprep.subr.bf16.mxu0 0
    %84 = vmatpush1.bf16.msra.mxu0 0
    %85 = vmatprep.subr.bf16.mxu0 0
    %86 = vmatpush1.bf16.msra.mxu0 0
    %87 = vmatprep.subr.bf16.mxu0 0
    %88 = vmatpush1.bf16.msra.mxu0 0
    %89 = vmatprep.subr.bf16.mxu0 0
    %90 = vmatpush1.bf16.msra.mxu0 %v70
    %91 = vmatprep.subr.bf16.mxu0 0
    %92 = vmatpush1.bf16.msra.mxu0 %v69
    %93 = vmatprep.subr.bf16.mxu0 0
    %94 = vmatpush2.bf16.msra.mxu0 0
    %95 = vmatprep.subr.bf16.mxu0 0
    %96 = vmatpush2.bf16.msra.mxu0 0
    %97 = vmatprep.subr.bf16.mxu0 0
    %98 = vmatpush2.bf16.msra.mxu0 0
    %99 = vmatprep.subr.bf16.mxu0 0
    %100 = vmatpush2.bf16.msra.mxu0 0
    %101 = vmatprep.subr.bf16.mxu0 0
    %102 = vmatpush2.bf16.msra.mxu0 0
    %103 = vmatprep.subr.bf16.mxu0 0
    %104 = vmatpush2.bf16.msra.mxu0 0
    %105 = vmatprep.subr.bf16.mxu0 0
    %106 = vmatpush2.bf16.msra.mxu0 0
    %107 = vmatprep.subr.bf16.mxu0 0
    %108 = vmatpush2.bf16.msra.mxu0 0
    %109 = vmatprep.mubr.bf16.mxu0 0
    %110 = vmatmul.mubr.bf16.gmra.mxu0 %v75
    %v111 = vpop.f32.mrf.mxu0
    %v112 = vadd.f32 %v59, %v111
    %v113 = vpop.f32.mrf.mxu0
    %v114 = vpop.f32.mrf.mxu0
    %v115 = vadd.f32 %v59, %v114
    %v116 = vpop.f32.mrf.mxu0
    %117 = vdwg.mxu0
    %v118 = vpack.c.bf16 %v115, %v112
    %v120 = vunpack.c.l.b16 %v118
    %v121 = vunpack.c.h.b16 %v118
    %v122 = vpack.c.b16 %v120, %v120
    %v123 = vpack.c.b16 %v121, %v121
    %vm126 = vcmask 257024
    %127 = vst.msk [vmem:[#allocation7] sm:$0xf] %vm126, %v122
    %128 = vst.msk [vmem:[#allocation7 + $0x4] sm:$0xf] %vm126, %v123
    %129 = vrot.lane.b32.xlu0 %v122, 96
    %v130 = vpop.permute.xlu0 %129
    %131 = vrot.lane.b32.xlu0 %v123, 96
    %v132 = vpop.permute.xlu0 %131
    %vm135 = vcmask 519168
    %136 = vst.msk [vmem:[#allocation8] sm:$0xf] %vm135, %v130
    %137 = vst.msk [vmem:[#allocation8 + $0x4] sm:$0xf] %vm135, %v132
    // Predicated region
    $region22: #{tpu_custom_call.1} parent=1 // pred_check
      _
    $region23: #{tpu_custom_call.1} parent=1 // pred_check_branch
      %139 = sbr.rel (0) target = $region25
    $region24: #{tpu_custom_call.1} parent=1 // pred_region
      %s141 = ssub.s32 128, 128
      %142 = vsyncadd [#allocation4], %s141
      %s143 = sshll.u32 [#allocation7], 4
      %s144 = int_to_ptr.vmem [resolvable:$true] %s143
      %149 = dma.vmem_to_hbm [thread:$0]  %s144, 128, %s3, [#allocation4], 64, 64, 4
    $region25: #{tpu_custom_call.1} parent=1 // pred_fallthru
      _
    // Predicated region
    $region26: #{tpu_custom_call.1} parent=1 // pred_check
      _
    $region27: #{tpu_custom_call.1} parent=1 // pred_check_branch
      %151 = sbr.rel (0) target = $region29
    $region28: #{tpu_custom_call.1} parent=1 // pred_region
      %s153 = ssub.s32 128, 128
      %154 = vsyncadd [#allocation9], %s153
      %s155 = sshll.u32 [#allocation8], 4
      %s156 = int_to_ptr.vmem [resolvable:$true] %s155
      %161 = dma.vmem_to_hbm [thread:$0]  %s156, 128, %s4, [#allocation9], 64, 64, 4
    $region29: #{tpu_custom_call.1} parent=1 // pred_fallthru
      _
    // Predicated region
    $region30: #{tpu_custom_call.1} parent=1 // pred_check
      _
    $region31: #{tpu_custom_call.1} parent=1 // pred_check_branch
      %163 = sbr.rel (0) target = $region33
    $region32: #{tpu_custom_call.1} parent=1 // pred_region
      %164 = dma.done [#allocation4], 128
    $region33: #{tpu_custom_call.1} parent=1 // pred_fallthru
      _
    // Predicated region
    $region34: #{tpu_custom_call.1} parent=1 // pred_check
      _
    $region35: #{tpu_custom_call.1} parent=1 // pred_check_branch
      %166 = sbr.rel (0) target = $region37
    $region36: #{tpu_custom_call.1} parent=1 // pred_region
      %167 = dma.done [#allocation9], 128
    $region37: #{tpu_custom_call.1} parent=1 // pred_fallthru
      _
    %168 = vsyncpa [#allocation3], 1
    %169 = vsyncpa [#allocation6], 1
    %170 = vsyncpa [#allocation4], 1
    %171 = vsyncpa [#allocation9], 1

</llo_original>
